<compile_context>
chip_gen: v7x
topology: tpu7x:2x2x1
jax: 0.10.0
libtpu: 0.0.40
codegen_flags: <defaults>
</compile_context>

<pallas_src>
import jax
import jax.numpy as jnp
from jax import lax
from jax.experimental import pallas as pl
from jax.experimental.pallas import tpu as pltpu

LANE = 128                          # lane width
SUB = 8                             # sublane alignment
TR_MAX = 8192                       # rows per block: (8192,128) f32 = 4 MiB/buffer
VMEM_LIMIT = 40 * 1024 * 1024       # covers the 24 MiB 'none' footprint everywhere


def _round_up(a, m):
    return ((a + m - 1) // m) * m


def _bce_elementwise(x, y):
    """PyTorch-style clamped BCE loss, computed in f32."""
    x = x.astype(jnp.float32)
    y = y.astype(jnp.float32)
    log_x = jnp.maximum(jnp.log(x), -100.0)
    # log1p(-x) using only log(): u = fl(1-x); correct the rounding of u
    # (Goldberg, Thm 4).  Works for x in [0, 1] including the x == 1 padding.
    # TODO(synk): if Mosaic lowers jnp.log1p on the target chip, use it
    # directly (drops one log and the divide; only matters on v7x where
    # VPU/EUP start to bind).
    u = 1.0 - x
    corrected = jnp.log(u) * (-x) / (u - 1.0)
    log_1mx = jnp.where(u == 1.0, -x, corrected)
    log_1mx = jnp.maximum(log_1mx, -100.0)
    # -(y*log_x + (1-y)*log_1mx)  ==  (log_1mx - log_x)*y - log_1mx
    return (log_1mx - log_x) * y - log_1mx


def _bce_none_kernel(x_ref, y_ref, o_ref):
    o_ref[...] = _bce_elementwise(x_ref[...], y_ref[...]).astype(o_ref.dtype)


def _make_sum_kernel(tr, r_valid, bpp, n_blocks, gate_needed):
    """Kernel accumulating per-element loss into a resident (8,128) f32 block."""

    def _accumulate(acc_ref, loss):
        # (tr,128) -> (tr//8, 8, 128) regroups whole vregs, so the reduce over
        # the leading dim is plain VPU elementwise adds (no per-step XLU).
        acc_ref[...] += jnp.sum(loss.reshape(tr // SUB, SUB, LANE), axis=0)

    def kernel(x_ref, y_ref, acc_ref):
        i = pl.program_id(1)

        @pl.when(i == 0)
        def _():
            acc_ref[...] = jnp.zeros_like(acc_ref)

        loss = _bce_elementwise(x_ref[...], y_ref[...])

        if not gate_needed:
            _accumulate(acc_ref, loss)
        else:
            blk = pl.program_id(0) * bpp + i

            @pl.when(blk < n_blocks - 1)
            def _():
                _accumulate(acc_ref, loss)

            @pl.when(blk == n_blocks - 1)
            def _():
                # Only the final block pays for the row mask: rows >= r_valid
                # of a partial block hold unspecified data and must not reach
                # the accumulator.
                rows = blk * tr + lax.broadcasted_iota(jnp.int32, (tr, LANE), 0)
                _accumulate(acc_ref, jnp.where(rows < r_valid, loss, 0.0))
            # Blocks with blk >= n_blocks (over-provisioned ragged 2-way
            # split) are skipped entirely.

    return kernel


def bce_loss(inp, label, reduction="mean", tile_rows=None):
    """F.binary_cross_entropy(inp, label, reduction=...) via Pallas on TPU."""
    assert reduction in ("sum", "mean", "none")
    orig_shape = inp.shape
    out_dtype = inp.dtype
    n = inp.size
    trm = _round_up(int(tile_rows) if tile_rows is not None else TR_MAX, SUB)

    block_elems = SUB * LANE
    n_pad = _round_up(n, block_elems)

    x_flat = inp.reshape(-1)
    y_flat = label.reshape(-1)
    if n_pad != n:
        # Single padding copy; BCE(1, 1) == 0 so padded elements contribute
        # nothing to the reduction and are sliced off for 'none'.
        x_flat = jnp.pad(x_flat, (0, n_pad - n), constant_values=1)
        y_flat = jnp.pad(y_flat, (0, n_pad - n), constant_values=1)

    r = n_pad // LANE                   # multiple of 8
    x2 = x_flat.reshape(r, LANE)        # free reshape of the contiguous flat
    y2 = y_flat.reshape(r, LANE)

    if reduction == "none":
        tr = min(trm, r)
        n_blocks = pl.cdiv(r, tr)
        # TODO(synk): on v7x consider pipeline_mode=pl.Buffered(3) on the input
        # specs (VMEM headroom exists at TR_MAX); measure before keeping.
        loss2 = pl.pallas_call(
            _bce_none_kernel,
            out_shape=jax.ShapeDtypeStruct((r, LANE), out_dtype),
            grid=(n_blocks,),
            in_specs=[
                pl.BlockSpec((tr, LANE), lambda i: (i, 0)),
                pl.BlockSpec((tr, LANE), lambda i: (i, 0)),
            ],
            out_specs=pl.BlockSpec((tr, LANE), lambda i: (i, 0)),
            compiler_params=pltpu.CompilerParams(
                dimension_semantics=("parallel",),
                vmem_limit_bytes=VMEM_LIMIT),
        )(x2, y2)
        loss_flat = loss2.reshape(-1)
        if n_pad != n:
            loss_flat = loss_flat[:n]
        return loss_flat.reshape(orig_shape)

    # --- 'sum' / 'mean': accumulate inside the kernel, no full writeback. ---
    if r < 2 * SUB:
        parts, tr = 1, r
    else:
        # Aim for an even block count so the leading 'parallel' axis can split
        # the work across the two v7x TensorCores; on v5e/v6e it is a serial
        # loop with no extra HBM traffic (block count stays even).
        # TODO(synk): if xprof shows this axis is not core-sharded on v7x,
        # switch it to pltpu.CORE_PARALLEL.
        nb0 = pl.cdiv(r, trm)
        nb = nb0 + (nb0 % 2)            # round block count up to even
        parts = 2
        tr = min(trm, _round_up(pl.cdiv(r, nb), SUB))
    n_blocks = pl.cdiv(r, tr)
    bpp = pl.cdiv(n_blocks, parts)
    gate_needed = (parts * bpp != n_blocks) or (n_blocks * tr != r)

    def in_idx(p, i, _bpp=bpp, _nb=n_blocks):
        # Clamp so over-provisioned grid steps re-read the last valid block;
        # their contribution is skipped inside the kernel.
        return (jnp.minimum(p * _bpp + i, _nb - 1), 0)

    acc = pl.pallas_call(
        _make_sum_kernel(tr, r, bpp, n_blocks, gate_needed),
        out_shape=jax.ShapeDtypeStruct((parts * SUB, LANE), jnp.float32),
        grid=(parts, bpp),
        in_specs=[
            pl.BlockSpec((tr, LANE), in_idx),
            pl.BlockSpec((tr, LANE), in_idx),
        ],
        out_specs=pl.BlockSpec((SUB, LANE), lambda p, i: (p, 0)),
        compiler_params=pltpu.CompilerParams(
            dimension_semantics=("parallel", "arbitrary"),
            vmem_limit_bytes=VMEM_LIMIT),
    )(x2, y2)

    total = jnp.sum(acc)                # single tiny cross-lane reduce
    if reduction == "sum":
        return total.astype(out_dtype)
    return (total / jnp.float32(n)).astype(out_dtype)


def _bce_ref(inp, label, reduction="mean"):
    """Pure-JAX reference matching PyTorch F.binary_cross_entropy."""
    x = inp.astype(jnp.float32)
    y = label.astype(jnp.float32)
    loss = -(y * jnp.maximum(jnp.log(x), -100.0)
             + (1.0 - y) * jnp.maximum(jnp.log1p(-x), -100.0))
    if reduction == "none":
        return loss
    if reduction == "sum":
        return jnp.sum(loss)
    return jnp.mean(loss)


def _check(shape, key, tile_rows=None):
    k1, k2 = jax.random.split(key)
    # input must be a probability in (0, 1)
    x = jax.random.uniform(k1, shape, jnp.float32, minval=1e-4, maxval=1.0 - 1e-4)
    label = (jax.random.uniform(k2, shape, jnp.float32) > 0.5).astype(jnp.float32)

    out_mean = jax.block_until_ready(bce_loss(x, label, "mean", tile_rows=tile_rows))
    out_sum = jax.block_until_ready(bce_loss(x, label, "sum", tile_rows=tile_rows))
    out_none = jax.block_until_ready(bce_loss(x, label, "none", tile_rows=tile_rows))

    ref_mean = _bce_ref(x, label, "mean")
    ref_sum = _bce_ref(x, label, "sum")
    ref_none = _bce_ref(x, label, "none")

    assert out_none.shape == shape and out_none.dtype == x.dtype
    assert jnp.allclose(out_mean, ref_mean, rtol=1e-5, atol=1e-5)
    assert jnp.allclose(out_sum, ref_sum, rtol=1e-5, atol=1e-3)
    assert jnp.allclose(out_none, ref_none, rtol=1e-5, atol=1e-5)


if __name__ == "__main__":
    key = jax.random.PRNGKey(0)
    keys = jax.random.split(key, 3)

    # NCHW probability maps from a det head (aligned: no padding needed).
    _check((2, 4, 16, 16), keys[0])
    # Odd shape exercising the pad-to-1024 path.
    _check((2, 3, 13, 17), keys[1])
    # Small tile_rows to exercise multi-block accumulation, the clamped /
    # gated 2-way split with an odd block count, and the partial-block mask.
    _check((5, 8, 16, 8), keys[2], tile_rows=16)

    print("KERNEL_OK")
</pallas_src>

<mosaic_0001>
module attributes {stable_mosaic.version = 11 : i64} {
  func.func @kernel(%arg0: i32, %arg1: i32, %arg2: memref<8x128xf32, #tpu.memory_space<vmem>>, %arg3: memref<8x128xf32, #tpu.memory_space<vmem>>, %arg4: memref<8x128xf32, #tpu.memory_space<vmem>>) attributes {dimension_semantics = [#tpu.dimension_semantics<parallel>, #tpu.dimension_semantics<arbitrary>], iteration_bounds = array<i64: 2, 1>, scalar_prefetch = 0 : i64, scratch_operands = 0 : i64, tpu.core_type = #tpu.core_type<tc>, window_params = [{transform_indices = @transform_0, window_bounds = array<i64: 8, 128>}, {transform_indices = @transform_1, window_bounds = array<i64: 8, 128>}, {transform_indices = @transform_2, window_bounds = array<i64: 8, 128>}]} {
    %c0_i32 = arith.constant 0 : i32
    %0 = arith.cmpi eq, %arg1, %c0_i32 : i32
    %1 = arith.extui %0 : i1 to i32
    %c0_i32_0 = arith.constant 0 : i32
    %2 = arith.cmpi ne, %1, %c0_i32_0 : i32
    scf.if %2 {
      %cst_15 = arith.constant 0.000000e+00 : f32
      %32 = vector.broadcast %cst_15 : f32 to vector<8x128xf32>
      %c0_16 = arith.constant 0 : index
      %c0_17 = arith.constant 0 : index
      %33 = vector.load %arg4[%c0_16, %c0_17] : memref<8x128xf32, #tpu.memory_space<vmem>>, vector<8x128xf32>
      tpu.vector_store %arg4[%c0_16, %c0_17], %32 {strides = array<i32>} : memref<8x128xf32, #tpu.memory_space<vmem>>, vector<8x128xf32>,
    } else {
    }
    %c0 = arith.constant 0 : index
    %c0_1 = arith.constant 0 : index
    %3 = vector.load %arg2[%c0, %c0_1] : memref<8x128xf32, #tpu.memory_space<vmem>>, vector<8x128xf32>
    %c0_2 = arith.constant 0 : index
    %c0_3 = arith.constant 0 : index
    %4 = vector.load %arg3[%c0_2, %c0_3] : memref<8x128xf32, #tpu.memory_space<vmem>>, vector<8x128xf32>
    %5 = math.log %3 : vector<8x128xf32>
    %cst = arith.constant -1.000000e+02 : f32
    %6 = vector.broadcast %cst : f32 to vector<8x128xf32>
    %7 = arith.maximumf %5, %6 : vector<8x128xf32>
    %cst_4 = arith.constant 1.000000e+00 : f32
    %8 = vector.broadcast %cst_4 : f32 to vector<8x128xf32>
    %9 = arith.subf %8, %3 : vector<8x128xf32>
    %10 = math.log %9 : vector<8x128xf32>
    %cst_5 = arith.constant 0.000000e+00 : f32
    %11 = vector.broadcast %cst_5 : f32 to vector<8x128xf32>
    %12 = arith.subf %11, %3 : vector<8x128xf32>
    %13 = arith.mulf %10, %12 : vector<8x128xf32>
    %cst_6 = arith.constant 1.000000e+00 : f32
    %14 = vector.broadcast %cst_6 : f32 to vector<8x128xf32>
    %15 = arith.subf %9, %14 : vector<8x128xf32>
    %16 = arith.divf %13, %15 : vector<8x128xf32>
    %cst_7 = arith.constant 1.000000e+00 : f32
    %17 = vector.broadcast %cst_7 : f32 to vector<8x128xf32>
    %18 = arith.cmpf oeq, %9, %17 : vector<8x128xf32>
    %cst_8 = arith.constant 0.000000e+00 : f32
    %19 = vector.broadcast %cst_8 : f32 to vector<8x128xf32>
    %20 = arith.subf %19, %3 : vector<8x128xf32>
    %21 = arith.select %18, %20, %16 : vector<8x128xi1>, vector<8x128xf32>
    %cst_9 = arith.constant -1.000000e+02 : f32
    %22 = vector.broadcast %cst_9 : f32 to vector<8x128xf32>
    %23 = arith.maximumf %21, %22 : vector<8x128xf32>
    %24 = arith.subf %23, %7 : vector<8x128xf32>
    %25 = arith.mulf %24, %4 : vector<8x128xf32>
    %26 = arith.subf %25, %23 : vector<8x128xf32>
    %c0_10 = arith.constant 0 : index
    %c0_11 = arith.constant 0 : index
    %27 = vector.load %arg4[%c0_10, %c0_11] : memref<8x128xf32, #tpu.memory_space<vmem>>, vector<8x128xf32>
    %28 = vector.shape_cast %26 : vector<8x128xf32> to vector<1x8x128xf32>
    %cst_12 = arith.constant dense<0.000000e+00> : vector<8x128xf32>
    %29 = vector.multi_reduction <add>, %28, %cst_12 [0] : vector<1x8x128xf32> to vector<8x128xf32>
    %30 = arith.addf %27, %29 : vector<8x128xf32>
    %c0_13 = arith.constant 0 : index
    %c0_14 = arith.constant 0 : index
    %31 = vector.load %arg4[%c0_13, %c0_14] : memref<8x128xf32, #tpu.memory_space<vmem>>, vector<8x128xf32>
    tpu.vector_store %arg4[%c0_13, %c0_14], %30 {strides = array<i32>} : memref<8x128xf32, #tpu.memory_space<vmem>>, vector<8x128xf32>,
    return
  }
  func.func @transform_0(%arg0: i32, %arg1: i32) -> (i32, i32) {
    %c1_i32 = arith.constant 1 : i32
    %0 = arith.muli %arg0, %c1_i32 : i32
    %1 = arith.addi %0, %arg1 : i32
    %c1_i32_0 = arith.constant 1 : i32
    %2 = arith.minsi %1, %c1_i32_0 : i32
    %c0_i32 = arith.constant 0 : i32
    %c0_i32_1 = arith.constant 0 : i32
    return %2, %c0_i32 : i32, i32
  }
  func.func @transform_1(%arg0: i32, %arg1: i32) -> (i32, i32) {
    %c1_i32 = arith.constant 1 : i32
    %0 = arith.muli %arg0, %c1_i32 : i32
    %1 = arith.addi %0, %arg1 : i32
    %c1_i32_0 = arith.constant 1 : i32
    %2 = arith.minsi %1, %c1_i32_0 : i32
    %c0_i32 = arith.constant 0 : i32
    %c0_i32_1 = arith.constant 0 : i32
    return %2, %c0_i32 : i32, i32
  }
  func.func @transform_2(%arg0: i32, %arg1: i32) -> (i32, i32) {
    %c0_i32 = arith.constant 0 : i32
    %c0_i32_0 = arith.constant 0 : i32
    return %arg0, %c0_i32 : i32, i32
  }
}

</mosaic_0001>

<llo_original>
// kernel: tpu_custom_call.1
$region0: #{tpu_custom_call.1}
  #allocation0 [shape = 'u32[]', space=smem, size = 0x4, offset = 0x4, fixed_abs, tag = 'smem constant byte address 0x4 - core index']
  #allocation1 [shape = 'u32[144,128]{1,0:T(1,128)}', space=vmem, size = 0x12000, scoped, tag = 'internal scratch']
  %s0 = inlined_call_operand.hbm [shape: f32[16,128], index: 0, kind: input, shape index: {}]
  %s1 = inlined_call_operand.hbm [shape: f32[16,128], index: 1, kind: input, shape index: {}]
  %s2 = inlined_call_operand.hbm [shape: f32[16,128], index: 2, kind: output, shape index: {}]
  %s3 = sld [smem:[#allocation0]]
  $region53: #{tpu_custom_call.1} parent=0
    _
  %s5 = ssub.s32 1, %s3
  %s6 = scalar_select 0, %s5, %s3
  $region1: #{tpu_custom_call.1} parent=0
    #allocation2 [shape = 'u8[8192]{0}', space=vmem, size = 0x2000, scoped, tag = 'input window, operand 0']
    #allocation3 [shape = 's32[2]{0}', space=sflag, size = 0x8, scoped, tag = 'scoped memory for tpu_custom_call.1']
    #allocation4 [shape = 's32[2]{0}', space=sflag, size = 0x8, scoped, tag = 'scoped memory for tpu_custom_call.1']
    #allocation5 [shape = 'u8[8192]{0}', space=vmem, size = 0x2000, scoped, tag = 'input window, operand 1']
    #allocation6 [shape = 's32[2]{0}', space=sflag, size = 0x8, scoped, tag = 'scoped memory for tpu_custom_call.1']
    #allocation7 [shape = 'u8[8192]{0}', space=vmem, size = 0x2000, scoped, tag = 'output window, operand 0']
    %7 = vsyncpa [#allocation3], 0
    %s8 = scalar_lea.sflag [#allocation3], 1
    %9 = vsyncpa %s8, 0
    %10 = vsyncpa [#allocation6], 0
    %s11 = scalar_lea.sflag [#allocation6], 1
    %12 = vsyncpa %s11, 0
    %13 = vsyncpa [#allocation4], 0
    %s14 = scalar_lea.sflag [#allocation4], 1
    %15 = vsyncpa %s14, 0
    loop: start=0, step=1, limit=4
    $region2: #{tpu_custom_call.1} parent=1 // loop_pre_header
      _
    $region3: #{tpu_custom_call.1} parent=1 // loop_header
      %s17 = sphi 0, %s21
      %p18 = scmp.ge.s32.totalorder %s17, 4
      %s24 = sphi 0, %s36
      %s25 = sphi 0, %s32
      %s26 = sphi 0, %s24
      %s27 = sphi 0, %s25
      %s28 = sphi 0, %s26
      %s29 = sphi 0, %s27
      %s45 = sphi 0, %s47
      %s48 = sphi 0, %s45
      %s49 = sphi 0, %s48
      %s65 = sphi 0, %s49
      %s77 = sphi 0, %s79
      %s80 = sphi 0, %s77
      %s81 = sphi 0, %s80
      %s97 = sphi 0, %s81
      %s103 = sphi 0, %s105
      %s106 = sphi 0, %s103
      %s107 = sphi 0, %s106
      %s123 = sphi 0, %s107
    $region4: #{tpu_custom_call.1} parent=1 // loop_header_branch
      %20 = sbr.rel (%p18) target = $region8
    $region5: #{tpu_custom_call.1} parent=1 // loop_body
      %s22 = ssub.s32 %s17, 1
      %s23 = ssub.s32 %s17, 2
      %s30 = sadd.s32 1, %s25
      %p31 = scmp.ge.s32.totalorder %s30, 1
      %s32 = scalar_select %p31, 0, %s30
      %s33 = sadd.s32 1, %s24
      %s34 = scalar_select %p31, %s33, %s24
      %p35 = scmp.ge.s32.totalorder %s34, 2
      %s36 = scalar_select %p35, 0, %s34
      %s37 = sadd.s32 %s24, %s25
      %p38 = scmp.lt.s32.totalorder %s37, 1
      %s39 = scalar_select %p38, %s37, 1
      %s40 = sadd.s32 %s36, %s32
      %p41 = scmp.lt.s32.totalorder %s40, 1
      %s42 = scalar_select %p41, %s40, 1
      %s43 = ssub.s32 %s39, %s42
      %p44 = scmp.eq.s32.totalorder %s43, 0
      %s46 = sadd.s32 %s45, 1
      %s47 = scalar_select %p44, %s45, %s46
      %p50 = pneg %p44
      %p51 = scmp.eq.s32.totalorder %s17, 1
      %p52 = por %p50, %p51
      %p53 = scmp.ne.s32.totalorder %s45, %s48
      %p54 = scmp.eq.s32.totalorder %s17, 0
      %p55 = por %p53, %p54
      %p56 = scmp.ne.s32.totalorder %s45, %s48
      %p57 = scmp.eq.s32.totalorder %s22, 1
      %p58 = por %p56, %p57
      %p59 = scmp.ne.s32.totalorder %s48, %s49
      %p60 = scmp.eq.s32.totalorder %s22, 0
      %p61 = por %p59, %p60
      %p62 = scmp.ne.s32.totalorder %s48, %s49
      %p63 = scmp.eq.s32.totalorder %s23, 1
      %p64 = por %p62, %p63
      %p66 = scmp.ne.s32.totalorder %s49, %s65
      %p67 = scmp.eq.s32.totalorder %s23, 0
      %p68 = por %p66, %p67
      %s69 = sadd.s32 %s24, %s25
      %p70 = scmp.lt.s32.totalorder %s69, 1
      %s71 = scalar_select %p70, %s69, 1
      %s72 = sadd.s32 %s36, %s32
      %p73 = scmp.lt.s32.totalorder %s72, 1
      %s74 = scalar_select %p73, %s72, 1
      %s75 = ssub.s32 %s71, %s74
      %p76 = scmp.eq.s32.totalorder %s75, 0
      %s78 = sadd.s32 %s77, 1
      %s79 = scalar_select %p76, %s77, %s78
      %p82 = pneg %p76
      %p83 = scmp.eq.s32.totalorder %s17, 1
      %p84 = por %p82, %p83
      %p85 = scmp.ne.s32.totalorder %s77, %s80
      %p86 = scmp.eq.s32.totalorder %s17, 0
      %p87 = por %p85, %p86
      %p88 = scmp.ne.s32.totalorder %s77, %s80
      %p89 = scmp.eq.s32.totalorder %s22, 1
      %p90 = por %p88, %p89
      %p91 = scmp.ne.s32.totalorder %s80, %s81
      %p92 = scmp.eq.s32.totalorder %s22, 0
      %p93 = por %p91, %p92
      %p94 = scmp.ne.s32.totalorder %s80, %s81
      %p95 = scmp.eq.s32.totalorder %s23, 1
      %p96 = por %p94, %p95
      %p98 = scmp.ne.s32.totalorder %s81, %s97
      %p99 = scmp.eq.s32.totalorder %s23, 0
      %p100 = por %p98, %p99
      %s101 = ssub.s32 %s24, %s36
      %p102 = scmp.eq.s32.totalorder %s101, 0
      %s104 = sadd.s32 %s103, 1
      %s105 = scalar_select %p102, %s103, %s104
      %p108 = pneg %p102
      %p109 = scmp.eq.s32.totalorder %s17, 1
      %p110 = por %p108, %p109
      %p111 = scmp.ne.s32.totalorder %s103, %s106
      %p112 = scmp.eq.s32.totalorder %s17, 0
      %p113 = por %p111, %p112
      %p114 = scmp.ne.s32.totalorder %s103, %s106
      %p115 = scmp.eq.s32.totalorder %s22, 1
      %p116 = por %p114, %p115
      %p117 = scmp.ne.s32.totalorder %s106, %s107
      %p118 = scmp.eq.s32.totalorder %s22, 0
      %p119 = por %p117, %p118
      %p120 = scmp.ne.s32.totalorder %s106, %s107
      %p121 = scmp.eq.s32.totalorder %s23, 1
      %p122 = por %p120, %p121
      %p124 = scmp.ne.s32.totalorder %s107, %s123
      %p125 = scmp.eq.s32.totalorder %s23, 0
      %p126 = por %p124, %p125
      %p127 = scmp.le.s32.totalorder 1, %s17
      %p128 = scmp.lt.s32.totalorder %s17, 3
      %p129 = pnand %p127, %p128
      %p130 = pneg %p129
      // Predicated region
      $region9: #{tpu_custom_call.1} parent=5 // pred_check
        _
      $region10: #{tpu_custom_call.1} parent=5 // pred_check_branch
        %132 = sbr.rel (%p129) target = $region12
      $region11: #{tpu_custom_call.1} parent=5 // pred_region
        %s133 = ssub.s32 %s17, 1
      $region12: #{tpu_custom_call.1} parent=5 // pred_fallthru
        _
      %p134 = scmp.lt.s32.totalorder %s17, 2
      // Predicated region
      $region13: #{tpu_custom_call.1} parent=5 // pred_check
        %p135 = pneg %p134
      $region14: #{tpu_custom_call.1} parent=5 // pred_check_branch
        %137 = sbr.rel (%p135) target = $region16
      $region15: #{tpu_custom_call.1} parent=5 // pred_region
        // Predicated region
        $region17: #{tpu_custom_call.1} parent=15 // pred_check
          %p138 = pneg %p55
        $region18: #{tpu_custom_call.1} parent=15 // pred_check_branch
          %140 = sbr.rel (%p138) target = $region20
        $region19: #{tpu_custom_call.1} parent=15 // pred_region
          %s141 = sand.u32 %s45, 1
          %s142 = scalar_lea.sflag [#allocation3], %s141
          %s143 = sand.u32 %s45, 1
          %s144 = smul.addr %s143, 8
          %s145 = scalar_lea.vmem [#allocation2], %s144
          %s146 = sadd.s32 %s24, %s25
          %p147 = scmp.lt.s32.totalorder %s146, 1
          %s148 = scalar_select %p147, %s146, 1
          %s150 = ssub.s32 128, 128
          %151 = vsyncadd %s142, %s150
          %s152 = smul.addr %s148, 128
          %s153 = scalar_lea.hbm %s0, %s152
          %s155 = sshll.u32 %s145, 4
          %s156 = int_to_ptr.vmem [resolvable:$true] %s155
          %158 = dma.hbm_to_vmem [thread:$0]  %s153, 128, %s156, %s142
        $region20: #{tpu_custom_call.1} parent=15 // pred_fallthru
          _
        // Predicated region
        $region21: #{tpu_custom_call.1} parent=15 // pred_check
          %p159 = pneg %p87
        $region22: #{tpu_custom_call.1} parent=15 // pred_check_branch
          %161 = sbr.rel (%p159) target = $region24
        $region23: #{tpu_custom_call.1} parent=15 // pred_region
          %s162 = sand.u32 %s77, 1
          %s163 = scalar_lea.sflag [#allocation6], %s162
          %s164 = sand.u32 %s77, 1
          %s165 = smul.addr %s164, 8
          %s166 = scalar_lea.vmem [#allocation5], %s165
          %s167 = sadd.s32 %s24, %s25
          %p168 = scmp.lt.s32.totalorder %s167, 1
          %s169 = scalar_select %p168, %s167, 1
          %s171 = ssub.s32 128, 128
          %172 = vsyncadd %s163, %s171
          %s173 = smul.addr %s169, 128
          %s174 = scalar_lea.hbm %s1, %s173
          %s176 = sshll.u32 %s166, 4
          %s177 = int_to_ptr.vmem [resolvable:$true] %s176
          %179 = dma.hbm_to_vmem [thread:$0]  %s174, 128, %s177, %s163
        $region24: #{tpu_custom_call.1} parent=15 // pred_fallthru
          _
      $region16: #{tpu_custom_call.1} parent=5 // pred_fallthru
        _
      %p180 = scmp.le.s32.totalorder 1, %s17
      %p181 = scmp.lt.s32.totalorder %s17, 3
      %p182 = pnand %p180, %p181
      %p183 = pneg %p182
      // Predicated region
      $region25: #{tpu_custom_call.1} parent=5 // pred_check
        _
      $region26: #{tpu_custom_call.1} parent=5 // pred_check_branch
        %185 = sbr.rel (%p182) target = $region28
      $region27: #{tpu_custom_call.1} parent=5 // pred_region
        %s186 = ssub.s32 %s17, 1
        %s187 = sand.u32 %s48, 1
        %s188 = scalar_lea.sflag [#allocation3], %s187
        %s189 = sand.u32 %s48, 1
        %s190 = smul.addr %s189, 8
        %s191 = scalar_lea.vmem [#allocation2], %s190
        // Predicated region
        $region29: #{tpu_custom_call.1} parent=27 // pred_check
          %p192 = pneg %p61
        $region30: #{tpu_custom_call.1} parent=27 // pred_check_branch
          %194 = sbr.rel (%p192) target = $region32
        $region31: #{tpu_custom_call.1} parent=27 // pred_region
          %195 = dma.done %s188, 128
        $region32: #{tpu_custom_call.1} parent=27 // pred_fallthru
          _
        %s196 = sand.u32 %s80, 1
        %s197 = scalar_lea.sflag [#allocation6], %s196
        %s198 = sand.u32 %s80, 1
        %s199 = smul.addr %s198, 8
        %s200 = scalar_lea.vmem [#allocation5], %s199
        // Predicated region
        $region33: #{tpu_custom_call.1} parent=27 // pred_check
          %p201 = pneg %p93
        $region34: #{tpu_custom_call.1} parent=27 // pred_check_branch
          %203 = sbr.rel (%p201) target = $region36
        $region35: #{tpu_custom_call.1} parent=27 // pred_region
          %204 = dma.done %s197, 128
        $region36: #{tpu_custom_call.1} parent=27 // pred_fallthru
          _
        %s205 = sand.u32 %s48, 1
        %s206 = scalar_lea.sflag [#allocation3], %s205
        %s207 = sand.u32 %s48, 1
        %s208 = smul.addr %s207, 8
        %s209 = scalar_lea.vmem [#allocation2], %s208
        %p210 = pneg %p61
        %p211 = pneg %p58
        %s212 = sand.u32 %s80, 1
        %s213 = scalar_lea.sflag [#allocation6], %s212
        %s214 = sand.u32 %s80, 1
        %s215 = smul.addr %s214, 8
        %s216 = scalar_lea.vmem [#allocation5], %s215
        %p217 = pneg %p93
        %p218 = pneg %p90
        %p219 = pneg %p119
        %p220 = pneg %p116
        %s221 = sand.u32 %s106, 1
        %s222 = scalar_lea.sflag [#allocation4], %s221
        %s223 = sand.u32 %s106, 1
        %s224 = smul.addr %s223, 8
        %s225 = scalar_lea.vmem [#allocation7], %s224
        %s226 = sadd.s32 %s26, %s27
        %p227 = scmp.lt.s32.totalorder %s226, 1
        %s228 = scalar_select %p227, %s226, 1
        %s229 = sadd.s32 %s26, %s27
        %p230 = scmp.lt.s32.totalorder %s229, 1
        %s231 = scalar_select %p230, %s229, 1
        %p232 = scmp.eq.s32.totalorder %s27, 0
        // Predicated region
        $region37: #{tpu_custom_call.1} parent=27 // pred_check
          %p233 = pneg %p232
        $region38: #{tpu_custom_call.1} parent=27 // pred_check_branch
          %235 = sbr.rel (%p233) target = $region40
        $region39: #{tpu_custom_call.1} parent=27 // pred_region
          %236 = vst [vmem:[%s225] sm:$0xff] 0.0
        $region40: #{tpu_custom_call.1} parent=27 // pred_fallthru
          _
        %v237 = vld [vmem:[%s191] sm:$0xff]
        %v238 = vld [vmem:[%s200] sm:$0xff]
        %v239 = vlog2.pop %v237
        %v240 = vmul.f32 %v239, 0.6931472
        %v241 = vmax.f32 %v240, -100.0
        %v242 = vsub.f32 1.0, %v237
        %v243 = vlog2.pop %v242
        %v244 = vmul.f32 %v243, 0.6931472
        %v245 = vsub.f32 0.0, %v237
        %v246 = vmul.f32 %v244, %v245
        %v247 = vsub.f32 %v242, 1.0
        %v248 = vrcp.pop %v247
        %v249 = vmul.f32 %v246, %v248
        %vm250 = vcmp.eq.f32.partialorder %v242, 1.0
        %v251 = vsel %vm250, %v245, %v249
        %v252 = vmax.f32 %v251, -100.0
        %v253 = vsub.f32 %v252, %v241
        %v254 = vmul.f32 %v253, %v238
        %v255 = vsub.f32 %v254, %v252
        %v256 = vld [vmem:[%s225] sm:$0xff]
        %v257 = vadd.f32 %v255, 0.0
        %v258 = vadd.f32 %v256, %v257
        %259 = vst [vmem:[%s225] sm:$0xff] %v258
        %s260 = sand.u32 %s106, 1
        %s261 = scalar_lea.sflag [#allocation4], %s260
        %s262 = sand.u32 %s106, 1
        %s263 = smul.addr %s262, 8
        %s264 = scalar_lea.vmem [#allocation7], %s263
        // Predicated region
        $region41: #{tpu_custom_call.1} parent=27 // pred_check
          %p265 = pneg %p116
        $region42: #{tpu_custom_call.1} parent=27 // pred_check_branch
          %267 = sbr.rel (%p265) target = $region44
        $region43: #{tpu_custom_call.1} parent=27 // pred_region
          %s269 = ssub.s32 128, 128
          %270 = vsyncadd %s261, %s269
          %s271 = smul.addr %s26, 128
          %s272 = scalar_lea.hbm %s2, %s271
          %s274 = sshll.u32 %s264, 4
          %s275 = int_to_ptr.vmem [resolvable:$true] %s274
          %277 = dma.vmem_to_hbm [thread:$0]  %s275, 128, %s272, %s261
        $region44: #{tpu_custom_call.1} parent=27 // pred_fallthru
          _
      $region28: #{tpu_custom_call.1} parent=5 // pred_fallthru
        _
      %p278 = scmp.le.s32.totalorder 2, %s17
      // Predicated region
      $region45: #{tpu_custom_call.1} parent=5 // pred_check
        %p279 = pneg %p278
      $region46: #{tpu_custom_call.1} parent=5 // pred_check_branch
        %281 = sbr.rel (%p279) target = $region48
      $region47: #{tpu_custom_call.1} parent=5 // pred_region
        %s282 = ssub.s32 %s17, 2
        // Predicated region
        $region49: #{tpu_custom_call.1} parent=47 // pred_check
          %p283 = pneg %p122
        $region50: #{tpu_custom_call.1} parent=47 // pred_check_branch
          %285 = sbr.rel (%p283) target = $region52
        $region51: #{tpu_custom_call.1} parent=47 // pred_region
          %s286 = sand.u32 %s107, 1
          %s287 = scalar_lea.sflag [#allocation4], %s286
          %s288 = sand.u32 %s107, 1
          %s289 = smul.addr %s288, 8
          %s290 = scalar_lea.vmem [#allocation7], %s289
          %291 = dma.done %s287, 128
        $region52: #{tpu_custom_call.1} parent=47 // pred_fallthru
          _
      $region48: #{tpu_custom_call.1} parent=5 // pred_fallthru
        _
    $region6: #{tpu_custom_call.1} parent=1 // loop_footer
      %s21 = sadd.s32 1, %s17
    $region7: #{tpu_custom_call.1} parent=1 // loop_footer_branch
      %16 = sbr.rel target = $region3
    $region8: #{tpu_custom_call.1} parent=1 // loop_exit
      _
    %292 = vsyncpa [#allocation3], 1
    %s293 = scalar_lea.sflag [#allocation3], 1
    %294 = vsyncpa %s293, 1
    %295 = vsyncpa [#allocation6], 1
    %s296 = scalar_lea.sflag [#allocation6], 1
    %297 = vsyncpa %s296, 1
    %298 = vsyncpa [#allocation4], 1
    %s299 = scalar_lea.sflag [#allocation4], 1
    %300 = vsyncpa %s299, 1

</llo_original>
